<compile_context>
chip_gen: v7x
topology: tpu7x:2x2x1
jax: 0.10.0
libtpu: 0.0.40
codegen_flags: <defaults>
</compile_context>

<pallas_src>
import functools

import jax
import jax.numpy as jnp
from jax.experimental import pallas as pl
from jax.experimental.pallas import tpu as pltpu


def _sh_kernel(x_ref, o_ref):
    # x_ref: (3, TB, 128) float32 ; o_ref: (16, TB, 128) out_dtype
    dt = o_ref.dtype
    v = x_ref[...] * 2.0 - 1.0          # map [0, 1] -> [-1, 1], as tcnn does
    x = v[0]                            # (TB, 128) dense slabs
    y = v[1]
    z = v[2]

    xy = x * y
    xz = x * z
    yz = y * z
    x2 = x * x
    y2 = y * y
    z2 = z * z
    x2_m_y2 = x2 - y2                   # shared by c8 and c14
    one_m_5z2 = 1.0 - 5.0 * z2          # shared by c11 and c13

    # degree 0
    o_ref[0] = jnp.full(x.shape, 0.28209479177387814, dtype=dt)
    # degree 1
    o_ref[1] = (-0.48860251190291987 * y).astype(dt)
    o_ref[2] = (0.48860251190291987 * z).astype(dt)
    o_ref[3] = (-0.48860251190291987 * x).astype(dt)
    # degree 2
    o_ref[4] = (1.0925484305920792 * xy).astype(dt)
    o_ref[5] = (-1.0925484305920792 * yz).astype(dt)
    o_ref[6] = (0.94617469575755997 * z2 - 0.31539156525251999).astype(dt)
    o_ref[7] = (-1.0925484305920792 * xz).astype(dt)
    o_ref[8] = (0.54627421529603959 * x2_m_y2).astype(dt)
    # degree 3
    o_ref[9] = (0.59004358992664352 * y * (y2 - 3.0 * x2)).astype(dt)
    o_ref[10] = (2.8906114426405538 * xy * z).astype(dt)
    o_ref[11] = (0.45704579946446572 * y * one_m_5z2).astype(dt)
    o_ref[12] = (0.3731763325901154 * z * (5.0 * z2 - 3.0)).astype(dt)
    o_ref[13] = (0.45704579946446572 * x * one_m_5z2).astype(dt)
    o_ref[14] = (1.4453057213202769 * z * x2_m_y2).astype(dt)
    o_ref[15] = (0.59004358992664352 * x * (3.0 * y2 - x2)).astype(dt)


def _round_up(a: int, b: int) -> int:
    return ((a + b - 1) // b) * b


def _select_tile(nb: int, block_rows: int, sub: int):
    """Pick (tb, nb_pad): tb = sublane-blocks per grid step.

    Keeps >=4 grid steps when the input is large enough (v7x has 2 TensorCores
    and the grid axis is 'parallel'); tiny inputs get a single full-extent block.
    """
    target = min(block_rows, pl.cdiv(nb, 4))
    tb = max(sub, (target // sub) * sub)
    if tb >= nb:
        nb_pad = _round_up(nb, sub)
        tb = nb_pad
    else:
        nb_pad = _round_up(nb, tb)
    return tb, nb_pad


@functools.partial(
    jax.jit,
    static_argnames=("block_rows", "out_dtype", "channel_major_in", "channel_major_out"),
)
def sh_encode(
    points: jax.Array,
    block_rows: int = 512,
    out_dtype=jnp.float32,
    channel_major_in: bool = False,
    channel_major_out: bool = False,
):
    """SHEncoder(levels=4).forward.

    points: (N, 3) float32 in [0, 1]  (or (3, N) if channel_major_in=True, which
            skips the wrapper-side input transpose).
    Returns (N, 16) in `out_dtype` (PyTorch layout), or (16, N) if
    channel_major_out=True -- the zero-output-transpose fast path.
    block_rows: max sublane-blocks per grid step; 512 -> up to 65536 pts/step.
    out_dtype: jnp.float32 (default) or jnp.bfloat16 (halves the dominant output
               HBM stream; compute stays float32).
    """
    sub = 16 if jnp.dtype(out_dtype) == jnp.dtype(jnp.bfloat16) else 8
    assert block_rows > 0 and block_rows % sub == 0

    if channel_major_in:
        d, n = points.shape
    else:
        n, d = points.shape
    assert d == 3, "SHEncoder expects 3-D directions"

    # channel-major (3, N) view; pad only the tail.
    pts_cm = points.astype(jnp.float32)
    if not channel_major_in:
        pts_cm = pts_cm.T

    nb = pl.cdiv(n, 128)                     # number of 128-point lane groups
    tb, nb_pad = _select_tile(nb, block_rows, sub)
    n_pad = nb_pad * 128

    if n_pad != n:
        pts_cm = jnp.pad(pts_cm, ((0, 0), (0, n_pad - n)))
    x_cm = pts_cm.reshape(3, nb_pad, 128)    # lane-dense, channel-major layout

    out_itemsize = jnp.dtype(out_dtype).itemsize
    # double-buffered input + output blocks
    block_bytes = 2 * (3 * 4 + 16 * out_itemsize) * tb * 128
    compiler_kwargs = dict(dimension_semantics=("parallel",))
    if block_bytes > 12 * (1 << 20):
        # Only raise the scoped-VMEM limit when the tile needs it (v5e default is
        # 16 MiB); cap at ~40 MiB so we stay inside v7x's 64 MiB physical VMEM.
        compiler_kwargs["vmem_limit_bytes"] = int(min(block_bytes + (4 << 20), 40 << 20))

    out_cm = pl.pallas_call(
        _sh_kernel,
        out_shape=jax.ShapeDtypeStruct((16, nb_pad, 128), out_dtype),
        grid_spec=pltpu.PrefetchScalarGridSpec(
            num_scalar_prefetch=0,
            grid=(nb_pad // tb,),
            in_specs=[pl.BlockSpec((3, tb, 128), lambda i: (0, i, 0))],
            out_specs=pl.BlockSpec((16, tb, 128), lambda i: (0, i, 0)),
        ),
        compiler_params=pltpu.CompilerParams(**compiler_kwargs),
        cost_estimate=pl.CostEstimate(
            flops=45 * n_pad,
            transcendentals=0,
            bytes_accessed=(3 * 4 + 16 * out_itemsize) * n_pad,
        ),
    )(x_cm)

    out_cm = out_cm.reshape(16, n_pad)
    if channel_major_out:
        return out_cm[:, :n]                 # (16, N): no output transpose (fast path)
    return out_cm.T[:n]                      # (N, 16): PyTorch/tcnn convention


def _sh_reference(points: jax.Array) -> jax.Array:
    """Pure-JAX reference of tcnn's degree-4 SH encoding (for verification)."""
    v = points.astype(jnp.float32) * 2.0 - 1.0
    x, y, z = v[:, 0], v[:, 1], v[:, 2]
    xy, xz, yz = x * y, x * z, y * z
    x2, y2, z2 = x * x, y * y, z * z
    cols = [
        jnp.full_like(x, 0.28209479177387814),
        -0.48860251190291987 * y,
        0.48860251190291987 * z,
        -0.48860251190291987 * x,
        1.0925484305920792 * xy,
        -1.0925484305920792 * yz,
        0.94617469575755997 * z2 - 0.31539156525251999,
        -1.0925484305920792 * xz,
        0.54627421529603959 * x2 - 0.54627421529603959 * y2,
        0.59004358992664352 * y * (-3.0 * x2 + y2),
        2.8906114426405538 * xy * z,
        0.45704579946446572 * y * (1.0 - 5.0 * z2),
        0.3731763325901154 * z * (5.0 * z2 - 3.0),
        0.45704579946446572 * x * (1.0 - 5.0 * z2),
        1.4453057213202769 * z * (x2 - y2),
        0.59004358992664352 * x * (-x2 + 3.0 * y2),
    ]
    return jnp.stack(cols, axis=-1)


if __name__ == "__main__":
    # SHEncoder has no learned parameters (tcnn SphericalHarmonics is parameter-free).
    key = jax.random.PRNGKey(0)
    k1, k2 = jax.random.split(key)

    # Small case (single grid step, N not a multiple of 128 -> padding path).
    n_small = 200
    pts_small = jax.random.uniform(k1, (n_small, 3), dtype=jnp.float32)  # tcnn expects [0,1]
    out_small = jax.block_until_ready(sh_encode(pts_small))
    ref_small = _sh_reference(pts_small)
    assert out_small.shape == (n_small, 16), out_small.shape
    assert out_small.dtype == jnp.float32, out_small.dtype
    assert jnp.allclose(out_small, ref_small, atol=1e-5, rtol=1e-5), float(
        jnp.max(jnp.abs(out_small - ref_small))
    )

    # Multi-step grid (tb < nb): exercises tiling, block padding and the
    # >=4-grid-steps heuristic used for v7x megacore sharding.
    n_big = 6000
    pts_big = jax.random.uniform(k2, (n_big, 3), dtype=jnp.float32)
    out_big = jax.block_until_ready(sh_encode(pts_big))
    ref_big = _sh_reference(pts_big)
    assert out_big.shape == (n_big, 16), out_big.shape
    assert jnp.allclose(out_big, ref_big, atol=1e-5, rtol=1e-5), float(
        jnp.max(jnp.abs(out_big - ref_big))
    )

    # Fast path: channel-major input and output -> no wrapper-side transposes.
    out_cm = jax.block_until_ready(
        sh_encode(pts_big.T, channel_major_in=True, channel_major_out=True)
    )
    assert out_cm.shape == (16, n_big), out_cm.shape
    assert jnp.allclose(out_cm.T, ref_big, atol=1e-5, rtol=1e-5)

    # bf16 output variant (compute in f32, cast at store).
    out_bf16 = jax.block_until_ready(sh_encode(pts_big, out_dtype=jnp.bfloat16))
    assert out_bf16.shape == (n_big, 16), out_bf16.shape
    assert out_bf16.dtype == jnp.bfloat16, out_bf16.dtype
    assert jnp.allclose(out_bf16.astype(jnp.float32), ref_big, atol=2e-2, rtol=2e-2)

    print("KERNEL_OK")
</pallas_src>

<mosaic_0001>
module attributes {stable_mosaic.version = 11 : i64} {
  func.func @_sh_kernel(%arg0: i32, %arg1: memref<3x8x128xf32, #tpu.memory_space<vmem>>, %arg2: memref<16x8x128xf32, #tpu.memory_space<vmem>>) attributes {dimension_semantics = [#tpu.dimension_semantics<parallel>], iteration_bounds = array<i64: 1>, scalar_prefetch = 0 : i64, scratch_operands = 0 : i64, tpu.core_type = #tpu.core_type<tc>, window_params = [{transform_indices = @transform_0, window_bounds = array<i64: 3, 8, 128>}, {transform_indices = @transform_1, window_bounds = array<i64: 16, 8, 128>}]} {
    %c0 = arith.constant 0 : index
    %c0_0 = arith.constant 0 : index
    %c0_1 = arith.constant 0 : index
    %0 = vector.load %arg1[%c0, %c0_0, %c0_1] : memref<3x8x128xf32, #tpu.memory_space<vmem>>, vector<3x8x128xf32>
    %cst = arith.constant 2.000000e+00 : f32
    %1 = vector.broadcast %cst : f32 to vector<3x8x128xf32>
    %2 = arith.mulf %0, %1 : vector<3x8x128xf32>
    %cst_2 = arith.constant 1.000000e+00 : f32
    %3 = vector.broadcast %cst_2 : f32 to vector<3x8x128xf32>
    %4 = arith.subf %2, %3 : vector<3x8x128xf32>
    %5 = vector.extract_strided_slice %4 {offsets = [0, 0, 0], sizes = [1, 8, 128], strides = [1, 1, 1]} : vector<3x8x128xf32> to vector<1x8x128xf32>
    %6 = vector.shape_cast %5 : vector<1x8x128xf32> to vector<8x128xf32>
    %7 = vector.extract_strided_slice %4 {offsets = [1, 0, 0], sizes = [1, 8, 128], strides = [1, 1, 1]} : vector<3x8x128xf32> to vector<1x8x128xf32>
    %8 = vector.shape_cast %7 : vector<1x8x128xf32> to vector<8x128xf32>
    %9 = vector.extract_strided_slice %4 {offsets = [2, 0, 0], sizes = [1, 8, 128], strides = [1, 1, 1]} : vector<3x8x128xf32> to vector<1x8x128xf32>
    %10 = vector.shape_cast %9 : vector<1x8x128xf32> to vector<8x128xf32>
    %11 = arith.mulf %6, %8 : vector<8x128xf32>
    %12 = arith.mulf %6, %10 : vector<8x128xf32>
    %13 = arith.mulf %8, %10 : vector<8x128xf32>
    %14 = arith.mulf %6, %6 : vector<8x128xf32>
    %15 = arith.mulf %8, %8 : vector<8x128xf32>
    %16 = arith.mulf %10, %10 : vector<8x128xf32>
    %17 = arith.subf %14, %15 : vector<8x128xf32>
    %cst_3 = arith.constant 5.000000e+00 : f32
    %18 = vector.broadcast %cst_3 : f32 to vector<8x128xf32>
    %19 = arith.mulf %18, %16 : vector<8x128xf32>
    %cst_4 = arith.constant 1.000000e+00 : f32
    %20 = vector.broadcast %cst_4 : f32 to vector<8x128xf32>
    %21 = arith.subf %20, %19 : vector<8x128xf32>
    %cst_5 = arith.constant 0.282094806 : f32
    %22 = vector.broadcast %cst_5 : f32 to vector<8x128xf32>
    %c0_6 = arith.constant 0 : index
    %c0_7 = arith.constant 0 : index
    %c0_8 = arith.constant 0 : index
    %23 = vector.load %arg2[%c0_6, %c0_7, %c0_8] : memref<16x8x128xf32, #tpu.memory_space<vmem>>, vector<1x8x128xf32>
    %24 = vector.shape_cast %23 : vector<1x8x128xf32> to vector<8x128xf32>
    %25 = vector.shape_cast %22 : vector<8x128xf32> to vector<1x8x128xf32>
    tpu.vector_store %arg2[%c0_6, %c0_7, %c0_8], %25 {strides = array<i32>} : memref<16x8x128xf32, #tpu.memory_space<vmem>>, vector<1x8x128xf32>,
    %cst_9 = arith.constant -0.488602519 : f32
    %26 = vector.broadcast %cst_9 : f32 to vector<8x128xf32>
    %27 = arith.mulf %26, %8 : vector<8x128xf32>
    %c1 = arith.constant 1 : index
    %c0_10 = arith.constant 0 : index
    %c0_11 = arith.constant 0 : index
    %28 = vector.load %arg2[%c1, %c0_10, %c0_11] : memref<16x8x128xf32, #tpu.memory_space<vmem>>, vector<1x8x128xf32>
    %29 = vector.shape_cast %28 : vector<1x8x128xf32> to vector<8x128xf32>
    %30 = vector.shape_cast %27 : vector<8x128xf32> to vector<1x8x128xf32>
    tpu.vector_store %arg2[%c1, %c0_10, %c0_11], %30 {strides = array<i32>} : memref<16x8x128xf32, #tpu.memory_space<vmem>>, vector<1x8x128xf32>,
    %cst_12 = arith.constant 0.488602519 : f32
    %31 = vector.broadcast %cst_12 : f32 to vector<8x128xf32>
    %32 = arith.mulf %31, %10 : vector<8x128xf32>
    %c2 = arith.constant 2 : index
    %c0_13 = arith.constant 0 : index
    %c0_14 = arith.constant 0 : index
    %33 = vector.load %arg2[%c2, %c0_13, %c0_14] : memref<16x8x128xf32, #tpu.memory_space<vmem>>, vector<1x8x128xf32>
    %34 = vector.shape_cast %33 : vector<1x8x128xf32> to vector<8x128xf32>
    %35 = vector.shape_cast %32 : vector<8x128xf32> to vector<1x8x128xf32>
    tpu.vector_store %arg2[%c2, %c0_13, %c0_14], %35 {strides = array<i32>} : memref<16x8x128xf32, #tpu.memory_space<vmem>>, vector<1x8x128xf32>,
    %cst_15 = arith.constant -0.488602519 : f32
    %36 = vector.broadcast %cst_15 : f32 to vector<8x128xf32>
    %37 = arith.mulf %36, %6 : vector<8x128xf32>
    %c3 = arith.constant 3 : index
    %c0_16 = arith.constant 0 : index
    %c0_17 = arith.constant 0 : index
    %38 = vector.load %arg2[%c3, %c0_16, %c0_17] : memref<16x8x128xf32, #tpu.memory_space<vmem>>, vector<1x8x128xf32>
    %39 = vector.shape_cast %38 : vector<1x8x128xf32> to vector<8x128xf32>
    %40 = vector.shape_cast %37 : vector<8x128xf32> to vector<1x8x128xf32>
    tpu.vector_store %arg2[%c3, %c0_16, %c0_17], %40 {strides = array<i32>} : memref<16x8x128xf32, #tpu.memory_space<vmem>>, vector<1x8x128xf32>,
    %cst_18 = arith.constant 1.09254849 : f32
    %41 = vector.broadcast %cst_18 : f32 to vector<8x128xf32>
    %42 = arith.mulf %41, %11 : vector<8x128xf32>
    %c4 = arith.constant 4 : index
    %c0_19 = arith.constant 0 : index
    %c0_20 = arith.constant 0 : index
    %43 = vector.load %arg2[%c4, %c0_19, %c0_20] : memref<16x8x128xf32, #tpu.memory_space<vmem>>, vector<1x8x128xf32>
    %44 = vector.shape_cast %43 : vector<1x8x128xf32> to vector<8x128xf32>
    %45 = vector.shape_cast %42 : vector<8x128xf32> to vector<1x8x128xf32>
    tpu.vector_store %arg2[%c4, %c0_19, %c0_20], %45 {strides = array<i32>} : memref<16x8x128xf32, #tpu.memory_space<vmem>>, vector<1x8x128xf32>,
    %cst_21 = arith.constant -1.09254849 : f32
    %46 = vector.broadcast %cst_21 : f32 to vector<8x128xf32>
    %47 = arith.mulf %46, %13 : vector<8x128xf32>
    %c5 = arith.constant 5 : index
    %c0_22 = arith.constant 0 : index
    %c0_23 = arith.constant 0 : index
    %48 = vector.load %arg2[%c5, %c0_22, %c0_23] : memref<16x8x128xf32, #tpu.memory_space<vmem>>, vector<1x8x128xf32>
    %49 = vector.shape_cast %48 : vector<1x8x128xf32> to vector<8x128xf32>
    %50 = vector.shape_cast %47 : vector<8x128xf32> to vector<1x8x128xf32>
    tpu.vector_store %arg2[%c5, %c0_22, %c0_23], %50 {strides = array<i32>} : memref<16x8x128xf32, #tpu.memory_space<vmem>>, vector<1x8x128xf32>,
    %cst_24 = arith.constant 0.946174681 : f32
    %51 = vector.broadcast %cst_24 : f32 to vector<8x128xf32>
    %52 = arith.mulf %51, %16 : vector<8x128xf32>
    %cst_25 = arith.constant 0.31539157 : f32
    %53 = vector.broadcast %cst_25 : f32 to vector<8x128xf32>
    %54 = arith.subf %52, %53 : vector<8x128xf32>
    %c6 = arith.constant 6 : index
    %c0_26 = arith.constant 0 : index
    %c0_27 = arith.constant 0 : index
    %55 = vector.load %arg2[%c6, %c0_26, %c0_27] : memref<16x8x128xf32, #tpu.memory_space<vmem>>, vector<1x8x128xf32>
    %56 = vector.shape_cast %55 : vector<1x8x128xf32> to vector<8x128xf32>
    %57 = vector.shape_cast %54 : vector<8x128xf32> to vector<1x8x128xf32>
    tpu.vector_store %arg2[%c6, %c0_26, %c0_27], %57 {strides = array<i32>} : memref<16x8x128xf32, #tpu.memory_space<vmem>>, vector<1x8x128xf32>,
    %cst_28 = arith.constant -1.09254849 : f32
    %58 = vector.broadcast %cst_28 : f32 to vector<8x128xf32>
    %59 = arith.mulf %58, %12 : vector<8x128xf32>
    %c7 = arith.constant 7 : index
    %c0_29 = arith.constant 0 : index
    %c0_30 = arith.constant 0 : index
    %60 = vector.load %arg2[%c7, %c0_29, %c0_30] : memref<16x8x128xf32, #tpu.memory_space<vmem>>, vector<1x8x128xf32>
    %61 = vector.shape_cast %60 : vector<1x8x128xf32> to vector<8x128xf32>
    %62 = vector.shape_cast %59 : vector<8x128xf32> to vector<1x8x128xf32>
    tpu.vector_store %arg2[%c7, %c0_29, %c0_30], %62 {strides = array<i32>} : memref<16x8x128xf32, #tpu.memory_space<vmem>>, vector<1x8x128xf32>,
    %cst_31 = arith.constant 0.546274245 : f32
    %63 = vector.broadcast %cst_31 : f32 to vector<8x128xf32>
    %64 = arith.mulf %63, %17 : vector<8x128xf32>
    %c8 = arith.constant 8 : index
    %c0_32 = arith.constant 0 : index
    %c0_33 = arith.constant 0 : index
    %65 = vector.load %arg2[%c8, %c0_32, %c0_33] : memref<16x8x128xf32, #tpu.memory_space<vmem>>, vector<1x8x128xf32>
    %66 = vector.shape_cast %65 : vector<1x8x128xf32> to vector<8x128xf32>
    %67 = vector.shape_cast %64 : vector<8x128xf32> to vector<1x8x128xf32>
    tpu.vector_store %arg2[%c8, %c0_32, %c0_33], %67 {strides = array<i32>} : memref<16x8x128xf32, #tpu.memory_space<vmem>>, vector<1x8x128xf32>,
    %cst_34 = arith.constant 0.590043604 : f32
    %68 = vector.broadcast %cst_34 : f32 to vector<8x128xf32>
    %69 = arith.mulf %68, %8 : vector<8x128xf32>
    %cst_35 = arith.constant 3.000000e+00 : f32
    %70 = vector.broadcast %cst_35 : f32 to vector<8x128xf32>
    %71 = arith.mulf %70, %14 : vector<8x128xf32>
    %72 = arith.subf %15, %71 : vector<8x128xf32>
    %73 = arith.mulf %69, %72 : vector<8x128xf32>
    %c9 = arith.constant 9 : index
    %c0_36 = arith.constant 0 : index
    %c0_37 = arith.constant 0 : index
    %74 = vector.load %arg2[%c9, %c0_36, %c0_37] : memref<16x8x128xf32, #tpu.memory_space<vmem>>, vector<1x8x128xf32>
    %75 = vector.shape_cast %74 : vector<1x8x128xf32> to vector<8x128xf32>
    %76 = vector.shape_cast %73 : vector<8x128xf32> to vector<1x8x128xf32>
    tpu.vector_store %arg2[%c9, %c0_36, %c0_37], %76 {strides = array<i32>} : memref<16x8x128xf32, #tpu.memory_space<vmem>>, vector<1x8x128xf32>,
    %cst_38 = arith.constant 2.89061141 : f32
    %77 = vector.broadcast %cst_38 : f32 to vector<8x128xf32>
    %78 = arith.mulf %77, %11 : vector<8x128xf32>
    %79 = arith.mulf %78, %10 : vector<8x128xf32>
    %c10 = arith.constant 10 : index
    %c0_39 = arith.constant 0 : index
    %c0_40 = arith.constant 0 : index
    %80 = vector.load %arg2[%c10, %c0_39, %c0_40] : memref<16x8x128xf32, #tpu.memory_space<vmem>>, vector<1x8x128xf32>
    %81 = vector.shape_cast %80 : vector<1x8x128xf32> to vector<8x128xf32>
    %82 = vector.shape_cast %79 : vector<8x128xf32> to vector<1x8x128xf32>
    tpu.vector_store %arg2[%c10, %c0_39, %c0_40], %82 {strides = array<i32>} : memref<16x8x128xf32, #tpu.memory_space<vmem>>, vector<1x8x128xf32>,
    %cst_41 = arith.constant 0.457045794 : f32
    %83 = vector.broadcast %cst_41 : f32 to vector<8x128xf32>
    %84 = arith.mulf %83, %8 : vector<8x128xf32>
    %85 = arith.mulf %84, %21 : vector<8x128xf32>
    %c11 = arith.constant 11 : index
    %c0_42 = arith.constant 0 : index
    %c0_43 = arith.constant 0 : index
    %86 = vector.load %arg2[%c11, %c0_42, %c0_43] : memref<16x8x128xf32, #tpu.memory_space<vmem>>, vector<1x8x128xf32>
    %87 = vector.shape_cast %86 : vector<1x8x128xf32> to vector<8x128xf32>
    %88 = vector.shape_cast %85 : vector<8x128xf32> to vector<1x8x128xf32>
    tpu.vector_store %arg2[%c11, %c0_42, %c0_43], %88 {strides = array<i32>} : memref<16x8x128xf32, #tpu.memory_space<vmem>>, vector<1x8x128xf32>,
    %cst_44 = arith.constant 0.373176336 : f32
    %89 = vector.broadcast %cst_44 : f32 to vector<8x128xf32>
    %90 = arith.mulf %89, %10 : vector<8x128xf32>
    %cst_45 = arith.constant 5.000000e+00 : f32
    %91 = vector.broadcast %cst_45 : f32 to vector<8x128xf32>
    %92 = arith.mulf %91, %16 : vector<8x128xf32>
    %cst_46 = arith.constant 3.000000e+00 : f32
    %93 = vector.broadcast %cst_46 : f32 to vector<8x128xf32>
    %94 = arith.subf %92, %93 : vector<8x128xf32>
    %95 = arith.mulf %90, %94 : vector<8x128xf32>
    %c12 = arith.constant 12 : index
    %c0_47 = arith.constant 0 : index
    %c0_48 = arith.constant 0 : index
    %96 = vector.load %arg2[%c12, %c0_47, %c0_48] : memref<16x8x128xf32, #tpu.memory_space<vmem>>, vector<1x8x128xf32>
    %97 = vector.shape_cast %96 : vector<1x8x128xf32> to vector<8x128xf32>
    %98 = vector.shape_cast %95 : vector<8x128xf32> to vector<1x8x128xf32>
    tpu.vector_store %arg2[%c12, %c0_47, %c0_48], %98 {strides = array<i32>} : memref<16x8x128xf32, #tpu.memory_space<vmem>>, vector<1x8x128xf32>,
    %cst_49 = arith.constant 0.457045794 : f32
    %99 = vector.broadcast %cst_49 : f32 to vector<8x128xf32>
    %100 = arith.mulf %99, %6 : vector<8x128xf32>
    %101 = arith.mulf %100, %21 : vector<8x128xf32>
    %c13 = arith.constant 13 : index
    %c0_50 = arith.constant 0 : index
    %c0_51 = arith.constant 0 : index
    %102 = vector.load %arg2[%c13, %c0_50, %c0_51] : memref<16x8x128xf32, #tpu.memory_space<vmem>>, vector<1x8x128xf32>
    %103 = vector.shape_cast %102 : vector<1x8x128xf32> to vector<8x128xf32>
    %104 = vector.shape_cast %101 : vector<8x128xf32> to vector<1x8x128xf32>
    tpu.vector_store %arg2[%c13, %c0_50, %c0_51], %104 {strides = array<i32>} : memref<16x8x128xf32, #tpu.memory_space<vmem>>, vector<1x8x128xf32>,
    %cst_52 = arith.constant 1.44530571 : f32
    %105 = vector.broadcast %cst_52 : f32 to vector<8x128xf32>
    %106 = arith.mulf %105, %10 : vector<8x128xf32>
    %107 = arith.mulf %106, %17 : vector<8x128xf32>
    %c14 = arith.constant 14 : index
    %c0_53 = arith.constant 0 : index
    %c0_54 = arith.constant 0 : index
    %108 = vector.load %arg2[%c14, %c0_53, %c0_54] : memref<16x8x128xf32, #tpu.memory_space<vmem>>, vector<1x8x128xf32>
    %109 = vector.shape_cast %108 : vector<1x8x128xf32> to vector<8x128xf32>
    %110 = vector.shape_cast %107 : vector<8x128xf32> to vector<1x8x128xf32>
    tpu.vector_store %arg2[%c14, %c0_53, %c0_54], %110 {strides = array<i32>} : memref<16x8x128xf32, #tpu.memory_space<vmem>>, vector<1x8x128xf32>,
    %cst_55 = arith.constant 0.590043604 : f32
    %111 = vector.broadcast %cst_55 : f32 to vector<8x128xf32>
    %112 = arith.mulf %111, %6 : vector<8x128xf32>
    %cst_56 = arith.constant 3.000000e+00 : f32
    %113 = vector.broadcast %cst_56 : f32 to vector<8x128xf32>
    %114 = arith.mulf %113, %15 : vector<8x128xf32>
    %115 = arith.subf %114, %14 : vector<8x128xf32>
    %116 = arith.mulf %112, %115 : vector<8x128xf32>
    %c15 = arith.constant 15 : index
    %c0_57 = arith.constant 0 : index
    %c0_58 = arith.constant 0 : index
    %117 = vector.load %arg2[%c15, %c0_57, %c0_58] : memref<16x8x128xf32, #tpu.memory_space<vmem>>, vector<1x8x128xf32>
    %118 = vector.shape_cast %117 : vector<1x8x128xf32> to vector<8x128xf32>
    %119 = vector.shape_cast %116 : vector<8x128xf32> to vector<1x8x128xf32>
    tpu.vector_store %arg2[%c15, %c0_57, %c0_58], %119 {strides = array<i32>} : memref<16x8x128xf32, #tpu.memory_space<vmem>>, vector<1x8x128xf32>,
    return
  }
  func.func @transform_0(%arg0: i32) -> (i32, i32, i32) {
    %c0_i32 = arith.constant 0 : i32
    %c0_i32_0 = arith.constant 0 : i32
    %c0_i32_1 = arith.constant 0 : i32
    return %c0_i32, %arg0, %c0_i32_0 : i32, i32, i32
  }
  func.func @transform_1(%arg0: i32) -> (i32, i32, i32) {
    %c0_i32 = arith.constant 0 : i32
    %c0_i32_0 = arith.constant 0 : i32
    %c0_i32_1 = arith.constant 0 : i32
    return %c0_i32, %arg0, %c0_i32_0 : i32, i32, i32
  }
}

</mosaic_0001>

<llo_original>
// kernel: sh_encode.1
$region0: #{sh_encode.1}
  #allocation0 [shape = 'u32[]', space=smem, size = 0x4, offset = 0x4, fixed_abs, tag = 'smem constant byte address 0x4 - core index']
  #allocation1 [shape = 'u32[144,128]{1,0:T(1,128)}', space=vmem, size = 0x12000, scoped, tag = 'internal scratch']
  %s0 = inlined_call_operand.vmem [shape: f32[3,8,128], index: 0, kind: input, shape index: {}]
  %s1 = inlined_call_operand.vmem [shape: f32[16,8,128], index: 1, kind: output, shape index: {}]
  %s2 = sld [smem:[#allocation0]]
  $region14: #{sh_encode.1} parent=0
    _
  %s4 = ssub.s32 1, %s2
  %s5 = scalar_select 0, %s4, %s2
  // Predicated region
  $region2: #{sh_encode.1} parent=0 // pred_check
    _
  $region3: #{sh_encode.1} parent=0 // pred_check_branch
    %7 = sbr.rel (0) target = $region5
  $region4: #{sh_encode.1} parent=0 // pred_region
    _
  $region5: #{sh_encode.1} parent=0 // pred_fallthru
    _
  %v8 = vld [vmem:[%s0] sm:$0xff]
  %v9 = vld [vmem:[%s0 + $0x8] sm:$0xff]
  %v10 = vld [vmem:[%s0 + $0x10] sm:$0xff]
  %v11 = vmul.f32 %v8, 2.0
  %v12 = vmul.f32 %v9, 2.0
  %v13 = vmul.f32 %v10, 2.0
  %v14 = vsub.f32 %v11, 1.0
  %v15 = vsub.f32 %v12, 1.0
  %v16 = vsub.f32 %v13, 1.0
  %v17 = vmul.f32 %v14, %v15
  %v18 = vmul.f32 %v14, %v16
  %v19 = vmul.f32 %v15, %v16
  %v20 = vmul.f32 %v14, %v14
  %v21 = vmul.f32 %v15, %v15
  %v22 = vmul.f32 %v16, %v16
  %v23 = vsub.f32 %v20, %v21
  %v24 = vmul.f32 %v22, 5.0
  %v25 = vsub.f32 1.0, %v24
  %26 = vst [vmem:[%s1] sm:$0xff] 0.2820948
  %v27 = vmul.f32 %v15, -0.48860252
  %s28 = scalar_lea.vmem %s1, 8
  %29 = vst [vmem:[%s28] sm:$0xff] %v27
  %v30 = vmul.f32 %v16, 0.48860252
  %s31 = scalar_lea.vmem %s1, 16
  %32 = vst [vmem:[%s31] sm:$0xff] %v30
  %v33 = vmul.f32 %v14, -0.48860252
  %s34 = scalar_lea.vmem %s1, 24
  %35 = vst [vmem:[%s34] sm:$0xff] %v33
  %v36 = vmul.f32 %v17, 1.0925485
  %s37 = scalar_lea.vmem %s1, 32
  %38 = vst [vmem:[%s37] sm:$0xff] %v36
  %v39 = vmul.f32 %v19, -1.0925485
  %s40 = scalar_lea.vmem %s1, 40
  %41 = vst [vmem:[%s40] sm:$0xff] %v39
  %v42 = vmul.f32 %v22, 0.9461747
  %v43 = vsub.f32 %v42, 0.31539157
  %s44 = scalar_lea.vmem %s1, 48
  %45 = vst [vmem:[%s44] sm:$0xff] %v43
  %v46 = vmul.f32 %v18, -1.0925485
  %s47 = scalar_lea.vmem %s1, 56
  %48 = vst [vmem:[%s47] sm:$0xff] %v46
  %v49 = vmul.f32 %v23, 0.54627424
  %s50 = scalar_lea.vmem %s1, 64
  %51 = vst [vmem:[%s50] sm:$0xff] %v49
  %v52 = vmul.f32 %v15, 0.5900436
  %v53 = vmul.f32 %v20, 3.0
  %v54 = vsub.f32 %v21, %v53
  %v55 = vmul.f32 %v52, %v54
  %s56 = scalar_lea.vmem %s1, 72
  %57 = vst [vmem:[%s56] sm:$0xff] %v55
  %v58 = vmul.f32 %v17, 2.8906114
  %v59 = vmul.f32 %v58, %v16
  %s60 = scalar_lea.vmem %s1, 80
  %61 = vst [vmem:[%s60] sm:$0xff] %v59
  %v62 = vmul.f32 %v15, 0.4570458
  %v63 = vmul.f32 %v62, %v25
  %s64 = scalar_lea.vmem %s1, 88
  %65 = vst [vmem:[%s64] sm:$0xff] %v63
  %v66 = vmul.f32 %v16, 0.37317634
  %v67 = vsub.f32 %v24, 3.0
  %v68 = vmul.f32 %v66, %v67
  %s69 = scalar_lea.vmem %s1, 96
  %70 = vst [vmem:[%s69] sm:$0xff] %v68
  %v71 = vmul.f32 %v14, 0.4570458
  %v72 = vmul.f32 %v71, %v25
  %s73 = scalar_lea.vmem %s1, 104
  %74 = vst [vmem:[%s73] sm:$0xff] %v72
  %v75 = vmul.f32 %v16, 1.4453057
  %v76 = vmul.f32 %v75, %v23
  %s77 = scalar_lea.vmem %s1, 112
  %78 = vst [vmem:[%s77] sm:$0xff] %v76
  %v79 = vmul.f32 %v14, 0.5900436
  %v80 = vmul.f32 %v21, 3.0
  %v81 = vsub.f32 %v80, %v20
  %v82 = vmul.f32 %v79, %v81
  %s83 = scalar_lea.vmem %s1, 120
  %84 = vst [vmem:[%s83] sm:$0xff] %v82
  // Predicated region
  $region6: #{sh_encode.1} parent=0 // pred_check
    _
  $region7: #{sh_encode.1} parent=0 // pred_check_branch
    %86 = sbr.rel (0) target = $region9
  $region8: #{sh_encode.1} parent=0 // pred_region
    _
  $region9: #{sh_encode.1} parent=0 // pred_fallthru
    _
  // Predicated region
  $region10: #{sh_encode.1} parent=0 // pred_check
    _
  $region11: #{sh_encode.1} parent=0 // pred_check_branch
    %88 = sbr.rel (0) target = $region13
  $region12: #{sh_encode.1} parent=0 // pred_region
    _
  $region13: #{sh_encode.1} parent=0 // pred_fallthru
    _

</llo_original>
